<compile_context>
chip_gen: v7x
topology: tpu7x:2x2x1
jax: 0.10.0
libtpu: 0.0.40
codegen_flags: <defaults>
</compile_context>

<pallas_src>
import functools

import jax
import jax.numpy as jnp
from jax.experimental import pallas as pl
from jax.experimental.pallas import tpu as pltpu


# ----------------------------------------------------------------------------
# Hardware-aware sizing helpers.
# ----------------------------------------------------------------------------
def _vmem_capacity_bytes():
    cap = 128 * 1024 * 1024
    try:
        cap = int(pltpu.get_tpu_info().vmem_capacity_bytes)
    except Exception:
        pass
    return cap


def _num_tensorcores():
    """2 on chips with two TensorCores sharing HBM (v4/v5p megacore, v7x)."""
    try:
        kind = jax.devices()[0].device_kind.lower()
    except Exception:
        return 1
    if any(tag in kind for tag in ("v4", "v5p", "v7", "7x")):
        return 2
    return 1


def _sublane_multiple(itemsize):
    # 8 rows for f32, 16 for bf16, 32 for int8: keeps (8,128)-equivalent tiles
    # in the native input dtype.
    return 8 * max(1, 4 // int(itemsize))


def _pick_block_b(B, C, itemsize, vmem_cap):
    """Largest batch tile such that one native-dtype input tile is ~1-2 MiB."""
    sub = _sublane_multiple(itemsize)
    # ~2 MiB per input DMA chunk on 128 MiB-VMEM chips (v5e/v6e), ~1 MiB on
    # 64 MiB-VMEM v7x (double-buffered x 2 inputs + f32 temps must fit).
    tile_bytes = 2 * 1024 * 1024 if vmem_cap >= 96 * 1024 * 1024 else 1024 * 1024
    rows = max(sub, (tile_bytes // (C * int(itemsize))) // sub * sub)
    b_ceil = -(-B // sub) * sub
    return min(rows, b_ceil)


# ----------------------------------------------------------------------------
# Kernel.
# ----------------------------------------------------------------------------
def _kldiv_kernel(ys_ref, yt_ref, out_ref, acc_ref, *,
                  inv_T, batch, block_b, tiles_per_split):
    """One (block_b, C) batch tile: accumulate an (8, C) lane-dense KL partial."""
    p = pl.program_id(0)   # TensorCore / batch split (parallel)
    i = pl.program_id(1)   # reduction over batch tiles within the split

    @pl.when(i == 0)
    def _():
        acc_ref[...] = jnp.zeros_like(acc_ref)

    s = ys_ref[...].astype(jnp.float32) * inv_T
    t = yt_ref[...].astype(jnp.float32) * inv_T

    # Numerically-stable softmax statistics along the class axis (dim=1).
    zs = s - jnp.max(s, axis=1, keepdims=True)
    zt = t - jnp.max(t, axis=1, keepdims=True)
    sum_es = jnp.sum(jnp.exp(zs), axis=1, keepdims=True)   # (bb, 1)
    et = jnp.exp(zt)                                       # (bb, C), reused for p_t
    sum_et = jnp.sum(et, axis=1, keepdims=True)            # (bb, 1)

    # Fused KL:  p_t * (log_p_t - log_p_s)
    #         =  (et / sum_et) * ((zt - zs) + (log sum_es - log sum_et))
    # -> no materialized log_p_s / log_p_t / p_t full-size temporaries.
    row_delta = jnp.log(sum_es) - jnp.log(sum_et)           # (bb, 1)
    kl = (et * pl.reciprocal(sum_et)) * ((zt - zs) + row_delta)

    # Mask rows past the true batch (ragged last tile and, for an odd tile
    # count split 2-ways, a fully-phantom clamped tile).  Uses the *logical*
    # unclamped tile index, so re-read data in a phantom tile contributes 0.
    bb, c = kl.shape
    tile_start = (p * tiles_per_split + i) * block_b
    row_ids = jax.lax.broadcasted_iota(jnp.int32, (bb, 1), 0)
    kl = jnp.where(tile_start + row_ids < batch, kl, 0.0)

    # Fold the batch tile into an (8, C) partial with pure vreg-wise VPU adds
    # (rows 8 apart share a sublane of different vregs); the cross-lane reduce
    # and T^2 / B scaling happen once in the wrapper.
    acc_ref[...] += jnp.sum(kl.reshape(bb // 8, 8, c), axis=0)

    @pl.when(i == pl.num_programs(1) - 1)
    def _():
        out_ref[...] = acc_ref[...]   # lane-dense (8, C) unmasked store


# ----------------------------------------------------------------------------
# Wrapper.
# ----------------------------------------------------------------------------
def kldiv_loss(y_s, y_t, T, weights=None, block_b=None):
    """Pallas TPU implementation of KLDiv.forward(y_s, y_t, weights=None)."""
    if weights is not None:
        # TODO(synk): weighted KL path not implemented.
        raise NotImplementedError("weights != None is not supported")

    B, C = y_s.shape
    assert y_t.shape == (B, C)

    itemsize = jnp.dtype(y_s.dtype).itemsize
    vmem_cap = _vmem_capacity_bytes()
    sub = _sublane_multiple(itemsize)
    if block_b is None:
        block_b = _pick_block_b(B, C, itemsize, vmem_cap)
    assert block_b % sub == 0, (
        f"block_b must be a multiple of {sub} for dtype {y_s.dtype}")

    n_tiles = -(-B // block_b)
    # Split the batch across the two TensorCores only on chips that have two;
    # on 1-TC v5e/v6e a single contiguous reduction chain is strictly better.
    num_splits = 2 if (_num_tensorcores() >= 2 and n_tiles >= 2) else 1
    tiles_per_split = -(-n_tiles // num_splits)
    last_tile = n_tiles - 1

    kernel = functools.partial(
        _kldiv_kernel,
        inv_T=1.0 / float(T),
        batch=B,
        block_b=block_b,
        tiles_per_split=tiles_per_split,
    )

    def in_index(p, i):
        # Clamp so a phantom tile (odd n_tiles, 2-way split) re-reads the last
        # valid tile instead of going out of bounds; the kernel masks it.
        return (jnp.minimum(p * tiles_per_split + i, last_tile), 0)

    partials = pl.pallas_call(
        kernel,
        out_shape=jax.ShapeDtypeStruct((num_splits * 8, C), jnp.float32),
        grid_spec=pltpu.PrefetchScalarGridSpec(
            num_scalar_prefetch=0,
            grid=(num_splits, tiles_per_split),
            in_specs=[
                pl.BlockSpec((block_b, C), in_index),
                pl.BlockSpec((block_b, C), in_index),
            ],
            out_specs=pl.BlockSpec((8, C), lambda p, i: (p, 0)),
            scratch_shapes=[pltpu.VMEM((8, C), jnp.float32)],
        ),
        compiler_params=pltpu.CompilerParams(
            dimension_semantics=("parallel", "arbitrary"),
            # ~80 MiB on 128 MiB-VMEM chips, ~40 MiB on 64 MiB v7x.
            vmem_limit_bytes=int(min(vmem_cap * 5 // 8, 96 * 1024 * 1024)),
        ),
    )(y_s, y_t)

    # Single cross-lane/sublane reduce + T^2 / batchmean scaling in XLA.
    return (float(T) ** 2 / B) * jnp.sum(partials)


def _kldiv_reference(y_s, y_t, T):
    y_s = y_s.astype(jnp.float32)
    y_t = y_t.astype(jnp.float32)
    log_p_s = jax.nn.log_softmax(y_s / T, axis=1)
    log_p_t = jax.nn.log_softmax(y_t / T, axis=1)
    p_t = jax.nn.softmax(y_t / T, axis=1)
    return (T * T) * jnp.sum(p_t * (log_p_t - log_p_s)) / y_s.shape[0]


if __name__ == "__main__":
    T = 4.0
    key = jax.random.PRNGKey(0)
    k1, k2, k3, k4, k5, k6 = jax.random.split(key, 6)

    # Small logits consistent with the module: batch=16, classes=128.
    y_s = jax.random.normal(k1, (16, 128), dtype=jnp.float32)
    y_t = jax.random.normal(k2, (16, 128), dtype=jnp.float32)
    loss = kldiv_loss(y_s, y_t, T)
    jax.block_until_ready(loss)
    ref = _kldiv_reference(y_s, y_t, T)
    assert jnp.allclose(loss, ref, atol=1e-5, rtol=1e-5), (loss, ref)

    # Exercise the ragged-tail masking (no HBM padding) and multi-tile path:
    # B=100 is not a multiple of the forced block_b=32 (grid of 4 tiles).
    y_s2 = jax.random.normal(k3, (100, 128), dtype=jnp.float32)
    y_t2 = jax.random.normal(k4, (100, 128), dtype=jnp.float32)
    loss2 = kldiv_loss(y_s2, y_t2, T, block_b=32)
    jax.block_until_ready(loss2)
    ref2 = _kldiv_reference(y_s2, y_t2, T)
    assert jnp.allclose(loss2, ref2, atol=1e-5, rtol=1e-5), (loss2, ref2)

    # bf16 inputs (halved HBM traffic; upcast to f32 inside the kernel).
    y_s3 = jax.random.normal(k5, (24, 128), dtype=jnp.bfloat16)
    y_t3 = jax.random.normal(k6, (24, 128), dtype=jnp.bfloat16)
    loss3 = kldiv_loss(y_s3, y_t3, T)
    jax.block_until_ready(loss3)
    ref3 = _kldiv_reference(y_s3, y_t3, T)
    assert jnp.allclose(loss3, ref3, atol=1e-5, rtol=1e-4), (loss3, ref3)

    print("KERNEL_OK")
</pallas_src>

<mosaic_0001>
module attributes {stable_mosaic.version = 11 : i64} {
  func.func @_kldiv_kernel(%arg0: i32, %arg1: i32, %arg2: memref<16x128xf32, #tpu.memory_space<vmem>>, %arg3: memref<16x128xf32, #tpu.memory_space<vmem>>, %arg4: memref<8x128xf32, #tpu.memory_space<vmem>>, %arg5: memref<8x128xf32, #tpu.memory_space<vmem>>) attributes {dimension_semantics = [#tpu.dimension_semantics<parallel>, #tpu.dimension_semantics<arbitrary>], iteration_bounds = array<i64: 1, 1>, scalar_prefetch = 0 : i64, scratch_operands = 1 : i64, tpu.core_type = #tpu.core_type<tc>, window_params = [{transform_indices = @transform_0, window_bounds = array<i64: 16, 128>}, {transform_indices = @transform_1, window_bounds = array<i64: 16, 128>}, {transform_indices = @transform_2, window_bounds = array<i64: 8, 128>}]} {
    %c0_i32 = arith.constant 0 : i32
    %0 = arith.cmpi eq, %arg1, %c0_i32 : i32
    %1 = arith.extui %0 : i1 to i32
    %c0_i32_0 = arith.constant 0 : i32
    %2 = arith.cmpi ne, %1, %c0_i32_0 : i32
    scf.if %2 {
      %cst_18 = arith.constant 0.000000e+00 : f32
      %53 = vector.broadcast %cst_18 : f32 to vector<8x128xf32>
      %c0_19 = arith.constant 0 : index
      %c0_20 = arith.constant 0 : index
      %54 = vector.load %arg5[%c0_19, %c0_20] : memref<8x128xf32, #tpu.memory_space<vmem>>, vector<8x128xf32>
      tpu.vector_store %arg5[%c0_19, %c0_20], %53 {strides = array<i32>} : memref<8x128xf32, #tpu.memory_space<vmem>>, vector<8x128xf32>,
    } else {
    }
    %c0 = arith.constant 0 : index
    %c0_1 = arith.constant 0 : index
    %3 = vector.load %arg2[%c0, %c0_1] : memref<16x128xf32, #tpu.memory_space<vmem>>, vector<16x128xf32>
    %cst = arith.constant 2.500000e-01 : f32
    %4 = vector.broadcast %cst : f32 to vector<16x128xf32>
    %5 = arith.mulf %3, %4 : vector<16x128xf32>
    %c0_2 = arith.constant 0 : index
    %c0_3 = arith.constant 0 : index
    %6 = vector.load %arg3[%c0_2, %c0_3] : memref<16x128xf32, #tpu.memory_space<vmem>>, vector<16x128xf32>
    %cst_4 = arith.constant 2.500000e-01 : f32
    %7 = vector.broadcast %cst_4 : f32 to vector<16x128xf32>
    %8 = arith.mulf %6, %7 : vector<16x128xf32>
    %cst_5 = arith.constant dense<0xFF800000> : vector<16xf32>
    %9 = vector.multi_reduction <maximumf>, %5, %cst_5 [1] : vector<16x128xf32> to vector<16xf32>
    %10 = vector.shape_cast %9 : vector<16xf32> to vector<16x1xf32>
    %11 = vector.broadcast %10 : vector<16x1xf32> to vector<16x128xf32>
    %12 = arith.subf %5, %11 : vector<16x128xf32>
    %cst_6 = arith.constant dense<0xFF800000> : vector<16xf32>
    %13 = vector.multi_reduction <maximumf>, %8, %cst_6 [1] : vector<16x128xf32> to vector<16xf32>
    %14 = vector.shape_cast %13 : vector<16xf32> to vector<16x1xf32>
    %15 = vector.broadcast %14 : vector<16x1xf32> to vector<16x128xf32>
    %16 = arith.subf %8, %15 : vector<16x128xf32>
    %17 = math.exp %12 : vector<16x128xf32>
    %cst_7 = arith.constant dense<0.000000e+00> : vector<16xf32>
    %18 = vector.multi_reduction <add>, %17, %cst_7 [1] : vector<16x128xf32> to vector<16xf32>
    %19 = vector.shape_cast %18 : vector<16xf32> to vector<16x1xf32>
    %20 = math.exp %16 : vector<16x128xf32>
    %cst_8 = arith.constant dense<0.000000e+00> : vector<16xf32>
    %21 = vector.multi_reduction <add>, %20, %cst_8 [1] : vector<16x128xf32> to vector<16xf32>
    %22 = vector.shape_cast %21 : vector<16xf32> to vector<16x1xf32>
    %23 = math.log %19 : vector<16x1xf32>
    %24 = math.log %22 : vector<16x1xf32>
    %25 = arith.subf %23, %24 : vector<16x1xf32>
    %26 = tpu.reciprocal %22 : vector<16x1xf32> -> vector<16x1xf32>
    %27 = vector.broadcast %26 : vector<16x1xf32> to vector<16x128xf32>
    %28 = arith.mulf %20, %27 : vector<16x128xf32>
    %29 = arith.subf %16, %12 : vector<16x128xf32>
    %30 = vector.broadcast %25 : vector<16x1xf32> to vector<16x128xf32>
    %31 = arith.addf %29, %30 : vector<16x128xf32>
    %32 = arith.mulf %28, %31 : vector<16x128xf32>
    %c1_i32 = arith.constant 1 : i32
    %33 = arith.muli %arg0, %c1_i32 : i32
    %34 = arith.addi %33, %arg1 : i32
    %c16_i32 = arith.constant 16 : i32
    %35 = arith.muli %34, %c16_i32 : i32
    %36 = tpu.iota {dimensions = array<i32: 0>} : vector<16x1xi32>
    %37 = vector.broadcast %35 : i32 to vector<16x1xi32>
    %38 = arith.addi %37, %36 : vector<16x1xi32>
    %c16_i32_9 = arith.constant 16 : i32
    %39 = vector.broadcast %c16_i32_9 : i32 to vector<16x1xi32>
    %40 = arith.cmpi slt, %38, %39 : vector<16x1xi32>
    %cst_10 = arith.constant 0.000000e+00 : f32
    %41 = vector.shape_cast %40 : vector<16x1xi1> to vector<16x1xi1>
    %42 = vector.broadcast %41 : vector<16x1xi1> to vector<16x128xi1>
    %43 = vector.broadcast %cst_10 : f32 to vector<16x128xf32>
    %44 = arith.select %42, %32, %43 : vector<16x128xi1>, vector<16x128xf32>
    %c0_11 = arith.constant 0 : index
    %c0_12 = arith.constant 0 : index
    %45 = vector.load %arg5[%c0_11, %c0_12] : memref<8x128xf32, #tpu.memory_space<vmem>>, vector<8x128xf32>
    %46 = vector.shape_cast %44 : vector<16x128xf32> to vector<2x8x128xf32>
    %cst_13 = arith.constant dense<0.000000e+00> : vector<8x128xf32>
    %47 = vector.multi_reduction <add>, %46, %cst_13 [0] : vector<2x8x128xf32> to vector<8x128xf32>
    %48 = arith.addf %45, %47 : vector<8x128xf32>
    %c0_14 = arith.constant 0 : index
    %c0_15 = arith.constant 0 : index
    %49 = vector.load %arg5[%c0_14, %c0_15] : memref<8x128xf32, #tpu.memory_space<vmem>>, vector<8x128xf32>
    tpu.vector_store %arg5[%c0_14, %c0_15], %48 {strides = array<i32>} : memref<8x128xf32, #tpu.memory_space<vmem>>, vector<8x128xf32>,
    %c0_i32_16 = arith.constant 0 : i32
    %50 = arith.cmpi eq, %arg1, %c0_i32_16 : i32
    %51 = arith.extui %50 : i1 to i32
    %c0_i32_17 = arith.constant 0 : i32
    %52 = arith.cmpi ne, %51, %c0_i32_17 : i32
    scf.if %52 {
      %c0_18 = arith.constant 0 : index
      %c0_19 = arith.constant 0 : index
      %53 = vector.load %arg5[%c0_18, %c0_19] : memref<8x128xf32, #tpu.memory_space<vmem>>, vector<8x128xf32>
      %c0_20 = arith.constant 0 : index
      %c0_21 = arith.constant 0 : index
      %54 = vector.load %arg4[%c0_20, %c0_21] : memref<8x128xf32, #tpu.memory_space<vmem>>, vector<8x128xf32>
      tpu.vector_store %arg4[%c0_20, %c0_21], %53 {strides = array<i32>} : memref<8x128xf32, #tpu.memory_space<vmem>>, vector<8x128xf32>,
    } else {
    }
    return
  }
  func.func @transform_0(%arg0: i32, %arg1: i32) -> (i32, i32) {
    %c1_i32 = arith.constant 1 : i32
    %0 = arith.muli %arg0, %c1_i32 : i32
    %1 = arith.addi %0, %arg1 : i32
    %c0_i32 = arith.constant 0 : i32
    %2 = arith.minsi %1, %c0_i32 : i32
    %c0_i32_0 = arith.constant 0 : i32
    %c0_i32_1 = arith.constant 0 : i32
    return %2, %c0_i32_0 : i32, i32
  }
  func.func @transform_1(%arg0: i32, %arg1: i32) -> (i32, i32) {
    %c1_i32 = arith.constant 1 : i32
    %0 = arith.muli %arg0, %c1_i32 : i32
    %1 = arith.addi %0, %arg1 : i32
    %c0_i32 = arith.constant 0 : i32
    %2 = arith.minsi %1, %c0_i32 : i32
    %c0_i32_0 = arith.constant 0 : i32
    %c0_i32_1 = arith.constant 0 : i32
    return %2, %c0_i32_0 : i32, i32
  }
  func.func @transform_2(%arg0: i32, %arg1: i32) -> (i32, i32) {
    %c0_i32 = arith.constant 0 : i32
    %c0_i32_0 = arith.constant 0 : i32
    return %arg0, %c0_i32 : i32, i32
  }
}

</mosaic_0001>

<llo_original>
// kernel: tpu_custom_call.1
$region0: #{tpu_custom_call.1}
  #allocation0 [shape = 'u32[]', space=smem, size = 0x4, offset = 0x4, fixed_abs, tag = 'smem constant byte address 0x4 - core index']
  #allocation1 [shape = 'u32[144,128]{1,0:T(1,128)}', space=vmem, size = 0x12000, scoped, tag = 'internal scratch']
  #allocation2 [shape = 'f32[8,128]{1,0:T(8,128)}', space=vmem, size = 0x1000, scoped, tag = 'scratch operand']
  %s0 = inlined_call_operand.hbm [shape: f32[16,128], index: 0, kind: input, shape index: {}]
  %s1 = inlined_call_operand.hbm [shape: f32[16,128], index: 1, kind: input, shape index: {}]
  %s2 = inlined_call_operand.hbm [shape: f32[8,128], index: 2, kind: output, shape index: {}]
  %s3 = sld [smem:[#allocation0]]
  $region34: #{tpu_custom_call.1} parent=0
    _
  %s5 = ssub.s32 1, %s3
  %s6 = scalar_select 0, %s5, %s3
  $region1: #{tpu_custom_call.1} parent=0
    #allocation3 [shape = 'u8[8192]{0}', space=vmem, size = 0x2000, scoped, tag = 'input window, operand 0, single buffered']
    #allocation4 [shape = 's32[1]{0}', space=sflag, size = 0x4, scoped, tag = 'scoped memory for tpu_custom_call.1']
    #allocation5 [shape = 's32[1]{0}', space=sflag, size = 0x4, scoped, tag = 'scoped memory for tpu_custom_call.1']
    #allocation6 [shape = 'u8[8192]{0}', space=vmem, size = 0x2000, scoped, tag = 'input window, operand 1, single buffered']
    #allocation7 [shape = 's32[1]{0}', space=sflag, size = 0x4, scoped, tag = 'scoped memory for tpu_custom_call.1']
    #allocation8 [shape = 'u8[4096]{0}', space=vmem, size = 0x1000, scoped, tag = 'output window, operand 0, single buffered']
    %7 = vsyncpa [#allocation4], 0
    %8 = vsyncpa [#allocation7], 0
    %9 = vsyncpa [#allocation5], 0
    // Predicated region
    $region2: #{tpu_custom_call.1} parent=1 // pred_check
      _
    $region3: #{tpu_custom_call.1} parent=1 // pred_check_branch
      %11 = sbr.rel (0) target = $region5
    $region4: #{tpu_custom_call.1} parent=1 // pred_region
      %s12 = sadd.s32 0, 0
      %p13 = scmp.lt.s32.totalorder %s12, 0
      %s14 = scalar_select %p13, %s12, 0
      %s15 = smul.u32 2, %s14
      %s17 = ssub.s32 256, 256
      %18 = vsyncadd [#allocation4], %s17
      %s19 = smul.addr %s15, 128
      %s20 = scalar_lea.hbm %s0, %s19
      %s21 = sshll.u32 [#allocation3], 4
      %s22 = int_to_ptr.vmem [resolvable:$true] %s21
      %27 = dma.hbm_to_vmem [thread:$0]  %s20, 256, %s22, [#allocation4], 128, 128, 8
    $region5: #{tpu_custom_call.1} parent=1 // pred_fallthru
      _
    // Predicated region
    $region6: #{tpu_custom_call.1} parent=1 // pred_check
      _
    $region7: #{tpu_custom_call.1} parent=1 // pred_check_branch
      %29 = sbr.rel (0) target = $region9
    $region8: #{tpu_custom_call.1} parent=1 // pred_region
      %s30 = sadd.s32 0, 0
      %p31 = scmp.lt.s32.totalorder %s30, 0
      %s32 = scalar_select %p31, %s30, 0
      %s33 = smul.u32 2, %s32
      %s35 = ssub.s32 256, 256
      %36 = vsyncadd [#allocation7], %s35
      %s37 = smul.addr %s33, 128
      %s38 = scalar_lea.hbm %s1, %s37
      %s39 = sshll.u32 [#allocation6], 4
      %s40 = int_to_ptr.vmem [resolvable:$true] %s39
      %45 = dma.hbm_to_vmem [thread:$0]  %s38, 256, %s40, [#allocation7], 128, 128, 8
    $region9: #{tpu_custom_call.1} parent=1 // pred_fallthru
      _
    // Predicated region
    $region10: #{tpu_custom_call.1} parent=1 // pred_check
      _
    $region11: #{tpu_custom_call.1} parent=1 // pred_check_branch
      %47 = sbr.rel (0) target = $region13
    $region12: #{tpu_custom_call.1} parent=1 // pred_region
      %48 = dma.done [#allocation4], 256
    $region13: #{tpu_custom_call.1} parent=1 // pred_fallthru
      _
    // Predicated region
    $region14: #{tpu_custom_call.1} parent=1 // pred_check
      _
    $region15: #{tpu_custom_call.1} parent=1 // pred_check_branch
      %50 = sbr.rel (0) target = $region17
    $region16: #{tpu_custom_call.1} parent=1 // pred_region
      %51 = dma.done [#allocation7], 256
    $region17: #{tpu_custom_call.1} parent=1 // pred_fallthru
      _
    %s52 = sadd.s32 0, 0
    %p53 = scmp.lt.s32.totalorder %s52, 0
    %s54 = scalar_select %p53, %s52, 0
    %s55 = smul.u32 2, %s54
    %s56 = sadd.s32 0, 0
    %p57 = scmp.lt.s32.totalorder %s56, 0
    %s58 = scalar_select %p57, %s56, 0
    %s59 = smul.u32 2, %s58
    %p60 = scmp.eq.s32.totalorder 0, 0
    // Predicated region
    $region18: #{tpu_custom_call.1} parent=1 // pred_check
      %p61 = pneg %p60
    $region19: #{tpu_custom_call.1} parent=1 // pred_check_branch
      %63 = sbr.rel (%p61) target = $region21
    $region20: #{tpu_custom_call.1} parent=1 // pred_region
      %64 = vst [vmem:[#allocation2] sm:$0xff] 0.0
    $region21: #{tpu_custom_call.1} parent=1 // pred_fallthru
      _
    %v65 = vld [vmem:[#allocation3] sm:$0xff]
    %v66 = vld [vmem:[#allocation3 + $0x8] sm:$0xff]
    %v67 = vmul.f32 %v65, 0.25
    %v68 = vmul.f32 %v66, 0.25
    %v69 = vld [vmem:[#allocation6] sm:$0xff]
    %v70 = vld [vmem:[#allocation6 + $0x8] sm:$0xff]
    %v71 = vmul.f32 %v69, 0.25
    %v72 = vmul.f32 %v70, 0.25
    %73 = vmax.xlane.f32.xlu0 %v67
    %v74 = vpop.xlane.xlu0 %73
    %75 = vmax.xlane.f32.xlu0 %v68
    %v76 = vpop.xlane.xlu0 %75
    %v77 = vsub.f32 %v67, %v74
    %v78 = vsub.f32 %v68, %v76
    %79 = vmax.xlane.f32.xlu0 %v71
    %v80 = vpop.xlane.xlu0 %79
    %81 = vmax.xlane.f32.xlu0 %v72
    %v82 = vpop.xlane.xlu0 %81
    %v83 = vsub.f32 %v71, %v80
    %v84 = vsub.f32 %v72, %v82
    %v85 = vmul.f32 %v77, 1.442695
    %v86 = vpow.pop %v85
    %v87 = vmul.f32 %v78, 1.442695
    %v88 = vpow.pop %v87
    %89 = vadd.xlane.f32.xlu0 %v86
    %v90 = vpop.xlane.xlu0 %89
    %91 = vadd.xlane.f32.xlu0 %v88
    %v92 = vpop.xlane.xlu0 %91
    %v93 = vmul.f32 %v83, 1.442695
    %v94 = vpow.pop %v93
    %v95 = vmul.f32 %v84, 1.442695
    %v96 = vpow.pop %v95
    %97 = vadd.xlane.f32.xlu0 %v94
    %v98 = vpop.xlane.xlu0 %97
    %99 = vadd.xlane.f32.xlu0 %v96
    %v100 = vpop.xlane.xlu0 %99
    %v101 = vlog2.pop %v90
    %v102 = vmul.f32 %v101, 0.6931472
    %v103 = vlog2.pop %v92
    %v104 = vmul.f32 %v103, 0.6931472
    %v105 = vlog2.pop %v98
    %v106 = vmul.f32 %v105, 0.6931472
    %v107 = vlog2.pop %v100
    %v108 = vmul.f32 %v107, 0.6931472
    %v109 = vsub.f32 %v102, %v106
    %v110 = vsub.f32 %v104, %v108
    %v111 = vrcp.pop %v98
    %v112 = vrcp.pop %v100
    %v113 = vmul.f32 %v94, %v111
    %v114 = vmul.f32 %v96, %v112
    %v115 = vsub.f32 %v83, %v77
    %v116 = vsub.f32 %v84, %v78
    %v117 = vadd.f32 %v115, %v109
    %v118 = vadd.f32 %v116, %v110
    %v119 = vmul.f32 %v113, %v117
    %v120 = vmul.f32 %v114, %v118
    %s121 = sadd.s32 0, 0
    %s122 = smul.u32 %s121, 16
    %v123 = vlaneseq
    %v124 = vshrl.u32 %v123, 7
    %v125 = vadd.s32 %v124, 8
    %v126 = vstv %s122
    %v127 = vadd.s32 %v126, %v124
    %v128 = vadd.s32 %v126, %v125
    %vm129 = vcmp.lt.s32.totalorder %v127, 16
    %vm130 = vcmp.lt.s32.totalorder %v128, 16
    %v131 = vsel %vm129, 1, 0
    %v132 = vsel %vm130, 1, 0
    %vm133 = vcmp.eq.s32.totalorder %v131, 1
    %vm134 = vcmp.eq.s32.totalorder %v132, 1
    %v135 = vsel %vm133, %v119, 0.0
    %v136 = vsel %vm134, %v120, 0.0
    %v137 = vld [vmem:[#allocation2] sm:$0xff]
    %v138 = vadd.f32 %v135, %v136
    %v139 = vadd.f32 %v137, %v138
    %140 = vst [vmem:[#allocation2] sm:$0xff] %v139
    // Predicated region
    $region22: #{tpu_custom_call.1} parent=1 // pred_check
      %p141 = pneg %p60
    $region23: #{tpu_custom_call.1} parent=1 // pred_check_branch
      %143 = sbr.rel (%p141) target = $region25
    $region24: #{tpu_custom_call.1} parent=1 // pred_region
      %v144 = vld [vmem:[#allocation2] sm:$0xff]
      %145 = vst [vmem:[#allocation8] sm:$0xff] %v144
    $region25: #{tpu_custom_call.1} parent=1 // pred_fallthru
      _
    // Predicated region
    $region26: #{tpu_custom_call.1} parent=1 // pred_check
      _
    $region27: #{tpu_custom_call.1} parent=1 // pred_check_branch
      %147 = sbr.rel (0) target = $region29
    $region28: #{tpu_custom_call.1} parent=1 // pred_region
      %s149 = ssub.s32 128, 128
      %150 = vsyncadd [#allocation5], %s149
      %s152 = sshll.u32 [#allocation8], 4
      %s153 = int_to_ptr.vmem [resolvable:$true] %s152
      %155 = dma.vmem_to_hbm [thread:$0]  %s153, 128, %s2, [#allocation5]
    $region29: #{tpu_custom_call.1} parent=1 // pred_fallthru
      _
    // Predicated region
    $region30: #{tpu_custom_call.1} parent=1 // pred_check
      _
    $region31: #{tpu_custom_call.1} parent=1 // pred_check_branch
      %157 = sbr.rel (0) target = $region33
    $region32: #{tpu_custom_call.1} parent=1 // pred_region
      %158 = dma.done [#allocation5], 128
    $region33: #{tpu_custom_call.1} parent=1 // pred_fallthru
      _
    %159 = vsyncpa [#allocation4], 1
    %160 = vsyncpa [#allocation7], 1
    %161 = vsyncpa [#allocation5], 1

</llo_original>
